<compile_context>
chip_gen: v7x
topology: tpu7x:2x2x1
jax: 0.10.0
libtpu: 0.0.40
codegen_flags: <defaults>
</compile_context>

<pallas_src>
import jax
import jax.numpy as jnp
from jax.experimental import pallas as pl
from jax.experimental.pallas import tpu as pltpu


def _round_up(n, m):
    return ((n + m - 1) // m) * m


# -----------------------------------------------------------------------------
# Kernel body: one batch tile of  Linear(E->D) -> SiLU -> Linear(D->D).
# -----------------------------------------------------------------------------
def _timestep_fc_kernel(x_ref, w1_ref, b1_ref, w2_ref, b2_ref, o_ref):
    # In-kernel f32 -> bf16 cast of the activation tile (cheap VPU work hidden
    # under the MXU); avoids an extra HBM pass over x in the wrapper.
    x = x_ref[...].astype(jnp.bfloat16)
    # First Linear: (TB, E) @ (E, Dp) on the MXU, bf16 operands, f32 accum.
    h = jnp.dot(x, w1_ref[...], preferred_element_type=jnp.float32)
    h = h + b1_ref[...]                       # f32 bias add (lane-broadcast row)
    h = h * jax.nn.sigmoid(h)                 # SiLU in f32 (EUP sigmoid)
    # Second Linear: (TB, Dp) @ (Dp, Dp); cast hidden back to bf16 for the MXU.
    out = jnp.dot(h.astype(jnp.bfloat16), w2_ref[...],
                  preferred_element_type=jnp.float32)
    out = out + b2_ref[...]
    o_ref[...] = out.astype(o_ref.dtype)


# -----------------------------------------------------------------------------
# One-time weight preparation (hoisted out of the per-call path).
# -----------------------------------------------------------------------------
def prepare_timestep_fc_params(w1, b1, w2, b2):
    """Prepare padded bf16 weights once.

    Args (already transposed vs. PyTorch's (out, in) layout):
      w1: (E, D) float32, b1: (D,) float32, w2: (D, D) float32, b2: (D,) float32
    Returns a dict of bf16 weights / f32 biases zero-padded to Dp = round_up(D, 128)
    (lane-dense output stores, fully used MXU N dimension).
    """
    E, D = w1.shape
    assert w2.shape == (D, D) and b1.shape == (D,) and b2.shape == (D,)
    Dp = _round_up(D, 128)
    w1p = jnp.zeros((E, Dp), jnp.bfloat16).at[:, :D].set(w1.astype(jnp.bfloat16))
    w2p = jnp.zeros((Dp, Dp), jnp.bfloat16).at[:D, :D].set(w2.astype(jnp.bfloat16))
    b1p = jnp.zeros((1, Dp), jnp.float32).at[0, :D].set(b1.astype(jnp.float32))
    b2p = jnp.zeros((1, Dp), jnp.float32).at[0, :D].set(b2.astype(jnp.float32))
    return {"w1": w1p, "b1": b1p, "w2": w2p, "b2": b2p, "out_dim": D}


# -----------------------------------------------------------------------------
# Tiling / VMEM planning.
# -----------------------------------------------------------------------------
def _vmem_budget_bytes():
    """~75% of per-core VMEM (leaves headroom for Mosaic internals/semaphores)."""
    try:
        cap = int(pltpu.get_tpu_info().vmem_capacity_bytes)
    except Exception:
        cap = 64 << 20          # v7x per-TensorCore capacity (most restrictive)
    return min(cap * 3 // 4, 96 << 20)


def _plan_tiles(B, E, Dp, out_bytes, block_b, budget):
    """Pick the batch tile TB and padded batch Bp from a VMEM byte budget."""
    # Resident (single-buffered) operands: w1 (bf16), w2 (bf16), b1/b2 padded to
    # 8 sublanes in f32.
    resident = E * Dp * 2 + Dp * Dp * 2 + 2 * 8 * Dp * 4
    # Per-batch-row cost: double-buffered f32 x tile, double-buffered out tile,
    # plus in-kernel scratch (f32 h, bf16 h copy, bf16 x copy).
    per_row = 2 * E * 4 + 2 * Dp * out_bytes + Dp * 4 + Dp * 2 + E * 2
    avail = budget - resident
    if avail < 8 * per_row:
        # TODO(synk): N-tile the second matmul (w2 columns) so resident weights
        # fit the v7x 64 MiB budget for very large D.
        raise ValueError("TimeStepEmbeddingFC weights too large for the "
                         "single-tile VMEM plan on this device")
    max_tb = max(8, (avail // per_row) // 8 * 8)
    tb = min(_round_up(block_b, 8), max_tb)
    # Guarantee >= 2 grid steps so both v7x TensorCores get work (harmless on
    # the single-core v5e/v6e).
    tb = min(tb, max(8, _round_up((B + 1) // 2, 8)))
    bp = _round_up(B, tb)
    if bp // tb < 2:
        bp = 2 * tb
    footprint = resident + tb * per_row
    return tb, bp, footprint


def _resident_spec(shape):
    """BlockSpec for an operand that is loaded once and stays resident in VMEM.

    Constant index_map -> never re-fetched; Buffered(1) -> single buffer (the
    default pipeliner would otherwise allocate two).
    """
    idx = lambda i: (0,) * len(shape)
    buffered = getattr(pl, "Buffered", None)
    if buffered is not None:
        try:
            return pl.BlockSpec(shape, idx, pipeline_mode=buffered(1))
        except TypeError:
            pass  # older jax without pipeline_mode: fall back to default buffering
    return pl.BlockSpec(shape, idx)


# -----------------------------------------------------------------------------
# Steady-state forward: x (B, E) f32  ->  (B, D).
# -----------------------------------------------------------------------------
def timestep_embedding_fc(x, params, *, block_b=512, out_dtype=jnp.float32):
    """Fused forward of nn.Sequential(Linear(E, D), SiLU(), Linear(D, D)).

    `params` must come from `prepare_timestep_fc_params` (one-time weight prep).
    Set out_dtype=jnp.bfloat16 if downstream consumers are bf16 (halves the HBM
    writeback stream; biggest relative win on v5e).
    """
    B, E = x.shape
    w1p, b1p, w2p, b2p = params["w1"], params["b1"], params["w2"], params["b2"]
    D = params["out_dim"]
    Dp = w1p.shape[1]
    assert w1p.shape == (E, Dp)

    out_bytes = jnp.dtype(out_dtype).itemsize
    budget = _vmem_budget_bytes()
    TB, Bp, footprint = _plan_tiles(B, E, Dp, out_bytes, block_b, budget)

    # Batch padding (f32, single cheap pad; padded rows are sliced off below).
    xp = jnp.pad(x, ((0, Bp - B), (0, 0))) if Bp != B else x

    # Computed VMEM request: actual footprint + slack, never the full physical
    # VMEM of a v7x TensorCore.
    vmem_limit = int(min(budget, max(footprint * 3 // 2, 16 << 20)))

    cost = pl.CostEstimate(
        flops=2 * B * D * (E + D),
        transcendentals=B * D,                       # one sigmoid per hidden elem
        bytes_accessed=(B * E * 4 + E * D * 2 + D * D * 2 + 2 * D * 4
                        + B * D * out_bytes),
    )

    grid = (Bp // TB,)
    out = pl.pallas_call(
        _timestep_fc_kernel,
        out_shape=jax.ShapeDtypeStruct((Bp, Dp), out_dtype),
        grid_spec=pltpu.PrefetchScalarGridSpec(
            num_scalar_prefetch=0,
            grid=grid,
            in_specs=[
                pl.BlockSpec((TB, E), lambda i: (i, 0)),   # x tile (pipelined, f32)
                _resident_spec((E, Dp)),                   # w1 (resident, bf16)
                _resident_spec((1, Dp)),                   # b1 (resident, f32)
                _resident_spec((Dp, Dp)),                  # w2 (resident, bf16)
                _resident_spec((1, Dp)),                   # b2 (resident, f32)
            ],
            out_specs=pl.BlockSpec((TB, Dp), lambda i: (i, 0)),
        ),
        compiler_params=pltpu.CompilerParams(
            dimension_semantics=("parallel",),             # megacore on v7x
            vmem_limit_bytes=vmem_limit,
        ),
        cost_estimate=cost,
    )(xp, w1p, b1p, w2p, b2p)

    return out[:B, :D]


# -----------------------------------------------------------------------------
# References for correctness checks.
# -----------------------------------------------------------------------------
def _reference_bf16(x, w1, b1, w2, b2):
    # Same numerics as the kernel (bf16 MXU operands, f32 accum/activation).
    h = jnp.dot(x.astype(jnp.bfloat16), w1.astype(jnp.bfloat16),
                preferred_element_type=jnp.float32) + b1
    h = h * jax.nn.sigmoid(h)
    return jnp.dot(h.astype(jnp.bfloat16), w2.astype(jnp.bfloat16),
                   preferred_element_type=jnp.float32) + b2


def _reference_f32(x, w1, b1, w2, b2):
    h = x @ w1 + b1
    h = h * jax.nn.sigmoid(h)
    return h @ w2 + b2


if __name__ == "__main__":
    key = jax.random.PRNGKey(0)
    B, E, D = 8, 32, 64  # batch, embedding_dim, out_dim

    kx, kw1, kb1, kw2, kb2 = jax.random.split(key, 5)
    x = jax.random.normal(kx, (B, E), dtype=jnp.float32)
    # PyTorch Linear weight is (out, in); we store the transposed (in, out).
    w1 = jax.random.normal(kw1, (E, D), dtype=jnp.float32) * (1.0 / jnp.sqrt(E))
    b1 = jax.random.normal(kb1, (D,), dtype=jnp.float32) * 0.01
    w2 = jax.random.normal(kw2, (D, D), dtype=jnp.float32) * (1.0 / jnp.sqrt(D))
    b2 = jax.random.normal(kb2, (D,), dtype=jnp.float32) * 0.01

    # One-time weight preparation (outside the steady-state call path).
    params = jax.block_until_ready(prepare_timestep_fc_params(w1, b1, w2, b2))

    out = timestep_embedding_fc(x, params)
    out = jax.block_until_ready(out)
    assert out.shape == (B, D)

    # Tight check vs a reference with identical bf16/f32 mixed precision.
    ref_bf16 = _reference_bf16(x, w1, b1, w2, b2)
    assert jnp.allclose(out, ref_bf16, atol=2e-3, rtol=2e-3), \
        "mismatch vs bf16 reference"

    # Loose check vs full-f32 reference (bf16 MXU operands lose some precision).
    ref_f32 = _reference_f32(x, w1, b1, w2, b2)
    assert jnp.allclose(out, ref_f32, atol=5e-2, rtol=5e-2), \
        "mismatch vs f32 reference"

    print("KERNEL_OK")
</pallas_src>

<mosaic_0001>
module attributes {stable_mosaic.version = 11 : i64} {
  func.func @_timestep_fc_kernel(%arg0: i32, %arg1: memref<8x32xf32, #tpu.memory_space<vmem>>, %arg2: memref<32x128xbf16, #tpu.memory_space<vmem>>, %arg3: memref<1x128xf32, #tpu.memory_space<vmem>>, %arg4: memref<128x128xbf16, #tpu.memory_space<vmem>>, %arg5: memref<1x128xf32, #tpu.memory_space<vmem>>, %arg6: memref<8x128xf32, #tpu.memory_space<vmem>>) attributes {dimension_semantics = [#tpu.dimension_semantics<parallel>], iteration_bounds = array<i64: 2>, scalar_prefetch = 0 : i64, scratch_operands = 0 : i64, tpu.core_type = #tpu.core_type<tc>, window_params = [{transform_indices = @transform_0, window_bounds = array<i64: 8, 32>}, {pipeline_mode = #tpu.pipeline_mode<synchronous>, transform_indices = @transform_1, window_bounds = array<i64: 32, 128>}, {pipeline_mode = #tpu.pipeline_mode<synchronous>, transform_indices = @transform_2, window_bounds = array<i64: 1, 128>}, {pipeline_mode = #tpu.pipeline_mode<synchronous>, transform_indices = @transform_3, window_bounds = array<i64: 128, 128>}, {pipeline_mode = #tpu.pipeline_mode<synchronous>, transform_indices = @transform_4, window_bounds = array<i64: 1, 128>}, {transform_indices = @transform_5, window_bounds = array<i64: 8, 128>}]} {
    %c0 = arith.constant 0 : index
    %c0_0 = arith.constant 0 : index
    %0 = vector.load %arg1[%c0, %c0_0] : memref<8x32xf32, #tpu.memory_space<vmem>>, vector<8x32xf32>
    %1 = arith.truncf %0 : vector<8x32xf32> to vector<8x32xbf16>
    %c0_1 = arith.constant 0 : index
    %c0_2 = arith.constant 0 : index
    %2 = vector.load %arg2[%c0_1, %c0_2] : memref<32x128xbf16, #tpu.memory_space<vmem>>, vector<32x128xbf16>
    %cst = arith.constant dense<0.000000e+00> : vector<8x128xf32>
    %3 = tpu.matmul %1, %2, %cst {dimension_numbers = #tpu.dot_dimension_numbers<[1], [0], [0], [1], [0, 0, 1, 1], [], []>} : vector<8x32xbf16>, vector<32x128xbf16>, vector<8x128xf32> -> vector<8x128xf32>
    %c0_3 = arith.constant 0 : index
    %c0_4 = arith.constant 0 : index
    %4 = vector.load %arg3[%c0_3, %c0_4] : memref<1x128xf32, #tpu.memory_space<vmem>>, vector<1x128xf32>
    %5 = vector.broadcast %4 : vector<1x128xf32> to vector<8x128xf32>
    %6 = arith.addf %3, %5 : vector<8x128xf32>
    %7 = arith.negf %6 : vector<8x128xf32>
    %8 = math.exp %7 : vector<8x128xf32>
    %cst_5 = arith.constant 1.000000e+00 : f32
    %9 = vector.broadcast %cst_5 : f32 to vector<8x128xf32>
    %10 = arith.addf %9, %8 : vector<8x128xf32>
    %11 = arith.divf %9, %10 : vector<8x128xf32>
    %12 = arith.mulf %6, %11 : vector<8x128xf32>
    %13 = arith.truncf %12 : vector<8x128xf32> to vector<8x128xbf16>
    %c0_6 = arith.constant 0 : index
    %c0_7 = arith.constant 0 : index
    %14 = vector.load %arg4[%c0_6, %c0_7] : memref<128x128xbf16, #tpu.memory_space<vmem>>, vector<128x128xbf16>
    %cst_8 = arith.constant dense<0.000000e+00> : vector<8x128xf32>
    %15 = tpu.matmul %13, %14, %cst_8 {dimension_numbers = #tpu.dot_dimension_numbers<[1], [0], [0], [1], [0, 0, 1, 1], [], []>} : vector<8x128xbf16>, vector<128x128xbf16>, vector<8x128xf32> -> vector<8x128xf32>
    %c0_9 = arith.constant 0 : index
    %c0_10 = arith.constant 0 : index
    %16 = vector.load %arg5[%c0_9, %c0_10] : memref<1x128xf32, #tpu.memory_space<vmem>>, vector<1x128xf32>
    %17 = vector.broadcast %16 : vector<1x128xf32> to vector<8x128xf32>
    %18 = arith.addf %15, %17 : vector<8x128xf32>
    %c0_11 = arith.constant 0 : index
    %c0_12 = arith.constant 0 : index
    %19 = vector.load %arg6[%c0_11, %c0_12] : memref<8x128xf32, #tpu.memory_space<vmem>>, vector<8x128xf32>
    tpu.vector_store %arg6[%c0_11, %c0_12], %18 {strides = array<i32>} : memref<8x128xf32, #tpu.memory_space<vmem>>, vector<8x128xf32>,
    return
  }
  func.func @transform_0(%arg0: i32) -> (i32, i32) {
    %c0_i32 = arith.constant 0 : i32
    %c0_i32_0 = arith.constant 0 : i32
    return %arg0, %c0_i32 : i32, i32
  }
  func.func @transform_1(%arg0: i32) -> (i32, i32) {
    %c0_i32 = arith.constant 0 : i32
    %c0_i32_0 = arith.constant 0 : i32
    %c0_i32_1 = arith.constant 0 : i32
    return %c0_i32, %c0_i32_0 : i32, i32
  }
  func.func @transform_2(%arg0: i32) -> (i32, i32) {
    %c0_i32 = arith.constant 0 : i32
    %c0_i32_0 = arith.constant 0 : i32
    %c0_i32_1 = arith.constant 0 : i32
    return %c0_i32, %c0_i32_0 : i32, i32
  }
  func.func @transform_3(%arg0: i32) -> (i32, i32) {
    %c0_i32 = arith.constant 0 : i32
    %c0_i32_0 = arith.constant 0 : i32
    %c0_i32_1 = arith.constant 0 : i32
    return %c0_i32, %c0_i32_0 : i32, i32
  }
  func.func @transform_4(%arg0: i32) -> (i32, i32) {
    %c0_i32 = arith.constant 0 : i32
    %c0_i32_0 = arith.constant 0 : i32
    %c0_i32_1 = arith.constant 0 : i32
    return %c0_i32, %c0_i32_0 : i32, i32
  }
  func.func @transform_5(%arg0: i32) -> (i32, i32) {
    %c0_i32 = arith.constant 0 : i32
    %c0_i32_0 = arith.constant 0 : i32
    return %arg0, %c0_i32 : i32, i32
  }
}

</mosaic_0001>

<llo_original>
// kernel: tpu_custom_call.1
$region0: #{tpu_custom_call.1}
  #allocation0 [shape = 'u32[]', space=smem, size = 0x4, offset = 0x4, fixed_abs, tag = 'smem constant byte address 0x4 - core index']
  #allocation1 [shape = 'u32[144,128]{1,0:T(1,128)}', space=vmem, size = 0x12000, scoped, tag = 'internal scratch']
  %s0 = inlined_call_operand.hbm [shape: f32[16,32], index: 0, kind: input, shape index: {}]
  %s1 = inlined_call_operand.hbm [shape: bf16[32,128], index: 1, kind: input, shape index: {}]
  %s2 = inlined_call_operand.vmem [shape: f32[1,128], index: 2, kind: input, shape index: {}]
  %s3 = inlined_call_operand.hbm [shape: bf16[128,128], index: 3, kind: input, shape index: {}]
  %s4 = inlined_call_operand.vmem [shape: f32[1,128], index: 4, kind: input, shape index: {}]
  %s5 = inlined_call_operand.hbm [shape: f32[16,128], index: 5, kind: output, shape index: {}]
  %s6 = sld [smem:[#allocation0]]
  $region65: #{tpu_custom_call.1} parent=0
    _
  %s8 = ssub.s32 1, %s6
  %s9 = scalar_select 0, %s8, %s6
  $region1: #{tpu_custom_call.1} parent=0
    #allocation2 [shape = 'u8[8192]{0}', space=vmem, size = 0x2000, scoped, tag = 'input window, operand 0']
    #allocation3 [shape = 's32[2]{0}', space=sflag, size = 0x8, scoped, tag = 'scoped memory for tpu_custom_call.1']
    #allocation4 [shape = 's32[2]{0}', space=sflag, size = 0x8, scoped, tag = 'scoped memory for tpu_custom_call.1']
    #allocation5 [shape = 'u8[8192]{0}', space=vmem, size = 0x2000, scoped, tag = 'input window, operand 1, single buffered']
    #allocation6 [shape = 's32[1]{0}', space=sflag, size = 0x4, scoped, tag = 'scoped memory for tpu_custom_call.1']
    #allocation7 [shape = 'u8[32768]{0}', space=vmem, size = 0x8000, scoped, tag = 'input window, operand 3, single buffered']
    #allocation8 [shape = 'u8[8192]{0}', space=vmem, size = 0x2000, scoped, tag = 'output window, operand 0']
    %10 = vsyncpa [#allocation3], 0
    %s11 = scalar_lea.sflag [#allocation3], 1
    %12 = vsyncpa %s11, 0
    %13 = vsyncpa [#allocation6], 0
    %14 = vsyncpa [#allocation4], 0
    %s15 = scalar_lea.sflag [#allocation4], 1
    %16 = vsyncpa %s15, 0
    loop: start=0, step=1, limit=4
    $region2: #{tpu_custom_call.1} parent=1 // loop_pre_header
      _
    $region3: #{tpu_custom_call.1} parent=1 // loop_header
      %s18 = sphi 0, %s22
      %p19 = scmp.ge.s32.totalorder %s18, 4
      %s28 = sphi 0, %s30
      %s31 = sphi 0, %s28
      %s32 = sphi 0, %s31
      %s48 = sphi 0, %s32
      %s52 = sphi 0, %s52
      %s54 = sphi 0, %s52
      %s55 = sphi 0, %s54
      %s69 = sphi 0, %s55
      %s73 = sphi 0, %s73
      %s75 = sphi 0, %s73
      %s76 = sphi 0, %s75
      %s90 = sphi 0, %s76
      %s94 = sphi 0, %s94
      %s96 = sphi 0, %s94
      %s97 = sphi 0, %s96
      %s111 = sphi 0, %s97
      %s115 = sphi 0, %s115
      %s117 = sphi 0, %s115
      %s118 = sphi 0, %s117
      %s132 = sphi 0, %s118
      %s138 = sphi 0, %s140
      %s141 = sphi 0, %s138
      %s142 = sphi 0, %s141
      %s158 = sphi 0, %s142
    $region4: #{tpu_custom_call.1} parent=1 // loop_header_branch
      %21 = sbr.rel (%p19) target = $region8
    $region5: #{tpu_custom_call.1} parent=1 // loop_body
      %s23 = ssub.s32 %s18, 1
      %s24 = ssub.s32 %s18, 2
      %s25 = sadd.s32 %s18, 1
      %s26 = ssub.s32 %s18, %s25
      %p27 = scmp.eq.s32.totalorder %s26, 0
      %s29 = sadd.s32 %s28, 1
      %s30 = scalar_select %p27, %s28, %s29
      %p33 = pneg %p27
      %p34 = scmp.eq.s32.totalorder %s18, 1
      %p35 = por %p33, %p34
      %p36 = scmp.ne.s32.totalorder %s28, %s31
      %p37 = scmp.eq.s32.totalorder %s18, 0
      %p38 = por %p36, %p37
      %p39 = scmp.ne.s32.totalorder %s28, %s31
      %p40 = scmp.eq.s32.totalorder %s23, 1
      %p41 = por %p39, %p40
      %p42 = scmp.ne.s32.totalorder %s31, %s32
      %p43 = scmp.eq.s32.totalorder %s23, 0
      %p44 = por %p42, %p43
      %p45 = scmp.ne.s32.totalorder %s31, %s32
      %p46 = scmp.eq.s32.totalorder %s24, 1
      %p47 = por %p45, %p46
      %p49 = scmp.ne.s32.totalorder %s32, %s48
      %p50 = scmp.eq.s32.totalorder %s24, 0
      %p51 = por %p49, %p50
      %s53 = sadd.s32 %s52, 1
      %p56 = scmp.eq.s32.totalorder %s18, 1
      %p57 = scmp.ne.s32.totalorder %s52, %s54
      %p58 = scmp.eq.s32.totalorder %s18, 0
      %p59 = por %p57, %p58
      %p60 = scmp.ne.s32.totalorder %s52, %s54
      %p61 = scmp.eq.s32.totalorder %s23, 1
      %p62 = por %p60, %p61
      %p63 = scmp.ne.s32.totalorder %s54, %s55
      %p64 = scmp.eq.s32.totalorder %s23, 0
      %p65 = por %p63, %p64
      %p66 = scmp.ne.s32.totalorder %s54, %s55
      %p67 = scmp.eq.s32.totalorder %s24, 1
      %p68 = por %p66, %p67
      %p70 = scmp.ne.s32.totalorder %s55, %s69
      %p71 = scmp.eq.s32.totalorder %s24, 0
      %p72 = por %p70, %p71
      %s74 = sadd.s32 %s73, 1
      %p77 = scmp.eq.s32.totalorder %s18, 1
      %p78 = scmp.ne.s32.totalorder %s73, %s75
      %p79 = scmp.eq.s32.totalorder %s18, 0
      %p80 = por %p78, %p79
      %p81 = scmp.ne.s32.totalorder %s73, %s75
      %p82 = scmp.eq.s32.totalorder %s23, 1
      %p83 = por %p81, %p82
      %p84 = scmp.ne.s32.totalorder %s75, %s76
      %p85 = scmp.eq.s32.totalorder %s23, 0
      %p86 = por %p84, %p85
      %p87 = scmp.ne.s32.totalorder %s75, %s76
      %p88 = scmp.eq.s32.totalorder %s24, 1
      %p89 = por %p87, %p88
      %p91 = scmp.ne.s32.totalorder %s76, %s90
      %p92 = scmp.eq.s32.totalorder %s24, 0
      %p93 = por %p91, %p92
      %s95 = sadd.s32 %s94, 1
      %p98 = scmp.eq.s32.totalorder %s18, 1
      %p99 = scmp.ne.s32.totalorder %s94, %s96
      %p100 = scmp.eq.s32.totalorder %s18, 0
      %p101 = por %p99, %p100
      %p102 = scmp.ne.s32.totalorder %s94, %s96
      %p103 = scmp.eq.s32.totalorder %s23, 1
      %p104 = por %p102, %p103
      %p105 = scmp.ne.s32.totalorder %s96, %s97
      %p106 = scmp.eq.s32.totalorder %s23, 0
      %p107 = por %p105, %p106
      %p108 = scmp.ne.s32.totalorder %s96, %s97
      %p109 = scmp.eq.s32.totalorder %s24, 1
      %p110 = por %p108, %p109
      %p112 = scmp.ne.s32.totalorder %s97, %s111
      %p113 = scmp.eq.s32.totalorder %s24, 0
      %p114 = por %p112, %p113
      %s116 = sadd.s32 %s115, 1
      %p119 = scmp.eq.s32.totalorder %s18, 1
      %p120 = scmp.ne.s32.totalorder %s115, %s117
      %p121 = scmp.eq.s32.totalorder %s18, 0
      %p122 = por %p120, %p121
      %p123 = scmp.ne.s32.totalorder %s115, %s117
      %p124 = scmp.eq.s32.totalorder %s23, 1
      %p125 = por %p123, %p124
      %p126 = scmp.ne.s32.totalorder %s117, %s118
      %p127 = scmp.eq.s32.totalorder %s23, 0
      %p128 = por %p126, %p127
      %p129 = scmp.ne.s32.totalorder %s117, %s118
      %p130 = scmp.eq.s32.totalorder %s24, 1
      %p131 = por %p129, %p130
      %p133 = scmp.ne.s32.totalorder %s118, %s132
      %p134 = scmp.eq.s32.totalorder %s24, 0
      %p135 = por %p133, %p134
      %s136 = ssub.s32 %s18, %s25
      %p137 = scmp.eq.s32.totalorder %s136, 0
      %s139 = sadd.s32 %s138, 1
      %s140 = scalar_select %p137, %s138, %s139
      %p143 = pneg %p137
      %p144 = scmp.eq.s32.totalorder %s18, 1
      %p145 = por %p143, %p144
      %p146 = scmp.ne.s32.totalorder %s138, %s141
      %p147 = scmp.eq.s32.totalorder %s18, 0
      %p148 = por %p146, %p147
      %p149 = scmp.ne.s32.totalorder %s138, %s141
      %p150 = scmp.eq.s32.totalorder %s23, 1
      %p151 = por %p149, %p150
      %p152 = scmp.ne.s32.totalorder %s141, %s142
      %p153 = scmp.eq.s32.totalorder %s23, 0
      %p154 = por %p152, %p153
      %p155 = scmp.ne.s32.totalorder %s141, %s142
      %p156 = scmp.eq.s32.totalorder %s24, 1
      %p157 = por %p155, %p156
      %p159 = scmp.ne.s32.totalorder %s142, %s158
      %p160 = scmp.eq.s32.totalorder %s24, 0
      %p161 = por %p159, %p160
      %p162 = scmp.le.s32.totalorder 1, %s18
      %p163 = scmp.lt.s32.totalorder %s18, 3
      %p164 = pnand %p162, %p163
      %p165 = pneg %p164
      // Predicated region
      $region9: #{tpu_custom_call.1} parent=5 // pred_check
        _
      $region10: #{tpu_custom_call.1} parent=5 // pred_check_branch
        %167 = sbr.rel (%p164) target = $region12
      $region11: #{tpu_custom_call.1} parent=5 // pred_region
        %s168 = ssub.s32 %s18, 1
        // Predicated region
        $region13: #{tpu_custom_call.1} parent=11 // pred_check
          %p169 = pneg %p65
        $region14: #{tpu_custom_call.1} parent=11 // pred_check_branch
          %171 = sbr.rel (%p169) target = $region16
        $region15: #{tpu_custom_call.1} parent=11 // pred_region
          %s173 = ssub.s32 256, 256
          %174 = vsyncadd [#allocation6], %s173
          %s175 = sshll.u32 [#allocation5], 4
          %s176 = int_to_ptr.vmem [resolvable:$true] %s175
          %181 = dma.hbm_to_vmem [thread:$0]  %s1, 256, %s176, [#allocation6], 64, 64, 4
        $region16: #{tpu_custom_call.1} parent=11 // pred_fallthru
          _
        // Predicated region
        $region17: #{tpu_custom_call.1} parent=11 // pred_check
          %p182 = pneg %p86
        $region18: #{tpu_custom_call.1} parent=11 // pred_check_branch
          %184 = sbr.rel (%p182) target = $region20
        $region19: #{tpu_custom_call.1} parent=11 // pred_region
          _
        $region20: #{tpu_custom_call.1} parent=11 // pred_fallthru
          _
        // Predicated region
        $region21: #{tpu_custom_call.1} parent=11 // pred_check
          %p185 = pneg %p107
        $region22: #{tpu_custom_call.1} parent=11 // pred_check_branch
          %187 = sbr.rel (%p185) target = $region24
        $region23: #{tpu_custom_call.1} parent=11 // pred_region
          %s189 = ssub.s32 1024, 1024
          %190 = vsyncadd [#allocation6], %s189
          %s191 = sshll.u32 [#allocation7], 4
          %s192 = int_to_ptr.vmem [resolvable:$true] %s191
          %197 = dma.hbm_to_vmem [thread:$0]  %s3, 1024, %s192, [#allocation6], 64, 64, 4
        $region24: #{tpu_custom_call.1} parent=11 // pred_fallthru
          _
        // Predicated region
        $region25: #{tpu_custom_call.1} parent=11 // pred_check
          %p198 = pneg %p128
        $region26: #{tpu_custom_call.1} parent=11 // pred_check_branch
          %200 = sbr.rel (%p198) target = $region28
        $region27: #{tpu_custom_call.1} parent=11 // pred_region
          _
        $region28: #{tpu_custom_call.1} parent=11 // pred_fallthru
          _
      $region12: #{tpu_custom_call.1} parent=5 // pred_fallthru
        _
      %p201 = scmp.lt.s32.totalorder %s18, 2
      // Predicated region
      $region29: #{tpu_custom_call.1} parent=5 // pred_check
        %p202 = pneg %p201
      $region30: #{tpu_custom_call.1} parent=5 // pred_check_branch
        %204 = sbr.rel (%p202) target = $region32
      $region31: #{tpu_custom_call.1} parent=5 // pred_region
        // Predicated region
        $region33: #{tpu_custom_call.1} parent=31 // pred_check
          %p205 = pneg %p38
        $region34: #{tpu_custom_call.1} parent=31 // pred_check_branch
          %207 = sbr.rel (%p205) target = $region36
        $region35: #{tpu_custom_call.1} parent=31 // pred_region
          %s208 = sand.u32 %s28, 1
          %s209 = scalar_lea.sflag [#allocation3], %s208
          %s210 = sand.u32 %s28, 1
          %s211 = smul.addr %s210, 8
          %s212 = scalar_lea.vmem [#allocation2], %s211
          %s214 = ssub.s32 128, 128
          %215 = vsyncadd %s209, %s214
          %s216 = smul.addr %s18, 128
          %s217 = scalar_lea.hbm %s0, %s216
          %s219 = sshll.u32 %s212, 4
          %s220 = int_to_ptr.vmem [resolvable:$true] %s219
          %222 = dma.hbm_to_vmem [thread:$0]  %s217, 128, %s220, %s209
        $region36: #{tpu_custom_call.1} parent=31 // pred_fallthru
          _
      $region32: #{tpu_custom_call.1} parent=5 // pred_fallthru
        _
      %p223 = scmp.le.s32.totalorder 1, %s18
      %p224 = scmp.lt.s32.totalorder %s18, 3
      %p225 = pnand %p223, %p224
      %p226 = pneg %p225
      // Predicated region
      $region37: #{tpu_custom_call.1} parent=5 // pred_check
        _
      $region38: #{tpu_custom_call.1} parent=5 // pred_check_branch
        %228 = sbr.rel (%p225) target = $region40
      $region39: #{tpu_custom_call.1} parent=5 // pred_region
        %s229 = ssub.s32 %s18, 1
        %s230 = sand.u32 %s31, 1
        %s231 = scalar_lea.sflag [#allocation3], %s230
        %s232 = sand.u32 %s31, 1
        %s233 = smul.addr %s232, 8
        %s234 = scalar_lea.vmem [#allocation2], %s233
        // Predicated region
        $region41: #{tpu_custom_call.1} parent=39 // pred_check
          %p235 = pneg %p44
        $region42: #{tpu_custom_call.1} parent=39 // pred_check_branch
          %237 = sbr.rel (%p235) target = $region44
        $region43: #{tpu_custom_call.1} parent=39 // pred_region
          %238 = dma.done %s231, 128
        $region44: #{tpu_custom_call.1} parent=39 // pred_fallthru
          _
        // Predicated region
        $region45: #{tpu_custom_call.1} parent=39 // pred_check
          %p239 = pneg %p65
        $region46: #{tpu_custom_call.1} parent=39 // pred_check_branch
          %241 = sbr.rel (%p239) target = $region48
        $region47: #{tpu_custom_call.1} parent=39 // pred_region
          %242 = dma.done [#allocation6], 256
        $region48: #{tpu_custom_call.1} parent=39 // pred_fallthru
          _
        // Predicated region
        $region49: #{tpu_custom_call.1} parent=39 // pred_check
          %p243 = pneg %p107
        $region50: #{tpu_custom_call.1} parent=39 // pred_check_branch
          %245 = sbr.rel (%p243) target = $region52
        $region51: #{tpu_custom_call.1} parent=39 // pred_region
          %246 = dma.done [#allocation6], 1024
        $region52: #{tpu_custom_call.1} parent=39 // pred_fallthru
          _
        %s247 = sand.u32 %s31, 1
        %s248 = scalar_lea.sflag [#allocation3], %s247
        %s249 = sand.u32 %s31, 1
        %s250 = smul.addr %s249, 8
        %s251 = scalar_lea.vmem [#allocation2], %s250
        %p252 = pneg %p44
        %p253 = pneg %p41
        %p254 = pneg %p65
        %p255 = pneg %p62
        %p256 = pneg %p86
        %p257 = pneg %p83
        %p258 = pneg %p107
        %p259 = pneg %p104
        %p260 = pneg %p128
        %p261 = pneg %p125
        %p262 = pneg %p154
        %p263 = pneg %p151
        %s264 = sand.u32 %s141, 1
        %s265 = scalar_lea.sflag [#allocation4], %s264
        %s266 = sand.u32 %s141, 1
        %s267 = smul.addr %s266, 8
        %s268 = scalar_lea.vmem [#allocation8], %s267
        %v270 = vld [vmem:[%s234] sm:$0xff]
        %v271 = vpack.c.bf16 %v270, %v270
        %v272 = vld [vmem:[#allocation5] sm:$0xf]
        %v273 = vld [vmem:[#allocation5 + $0x4] sm:$0xf]
        %v274 = vld [vmem:[#allocation5 + $0x8] sm:$0xf]
        %v275 = vld [vmem:[#allocation5 + $0xc] sm:$0xf]
        %v276 = vld [vmem:[%s2] sm:$0x1]
        %v278 = vlaneseq
        %v279 = vshrl.u32 %v278, 7
        %v280 = vsub.s32 0, %v279
        %v281 = vrot.slane %v276, %v280
        %v287 = vunpack.c.l.b16 %v272
        %v288 = vunpack.c.l.b16 %v273
        %v289 = vunpack.c.l.b16 %v274
        %v290 = vunpack.c.l.b16 %v275
        %v291 = vpack.c.b16 %v288, %v287
        %v292 = vpack.c.b16 %v290, %v289
        %vm295 = vcmask 261120
        %v297 = vsel %vm295, %v271, 0
        %299 = vmatprep.subr.bf16.mxu0 0
        %300 = vmatpush1.bf16.msra.mxu0 %v291
        %301 = vmatprep.subr.bf16.mxu0 0
        %302 = vmatpush1.bf16.msra.mxu0 %v292
        %303 = vmatprep.subr.bf16.mxu0 0
        %304 = vmatpush1.bf16.msra.mxu0 0
        %305 = vmatprep.subr.bf16.mxu0 0
        %306 = vmatpush1.bf16.msra.mxu0 0
        %307 = vmatprep.subr.bf16.mxu0 0
        %308 = vmatpush1.bf16.msra.mxu0 0
        %309 = vmatprep.subr.bf16.mxu0 0
        %310 = vmatpush1.bf16.msra.mxu0 0
        %311 = vmatprep.subr.bf16.mxu0 0
        %312 = vmatpush1.bf16.msra.mxu0 0
        %313 = vmatprep.subr.bf16.mxu0 0
        %314 = vmatpush1.bf16.msra.mxu0 0
        %315 = vmatprep.subr.bf16.mxu0 0
        %316 = vmatpush1.bf16.msra.mxu0 0
        %317 = vmatprep.subr.bf16.mxu0 0
        %318 = vmatpush1.bf16.msra.mxu0 0
        %319 = vmatprep.subr.bf16.mxu0 0
        %320 = vmatpush1.bf16.msra.mxu0 0
        %321 = vmatprep.subr.bf16.mxu0 0
        %322 = vmatpush1.bf16.msra.mxu0 0
        %323 = vmatprep.subr.bf16.mxu0 0
        %324 = vmatpush1.bf16.msra.mxu0 0
        %325 = vmatprep.subr.bf16.mxu0 0
        %326 = vmatpush1.bf16.msra.mxu0 0
        %327 = vmatprep.subr.bf16.mxu0 0
        %328 = vmatpush1.bf16.msra.mxu0 0
        %329 = vmatprep.subr.bf16.mxu0 0
        %330 = vmatpush1.bf16.msra.mxu0 0
        %331 = vmatprep.mubr.bf16.mxu0 0
        %332 = vmatmul.mubr.bf16.gmra.mrb[0].mxu0 %v297
        %v333 = vpop.f32.mrb[0].mxu0
        %v334 = vadd.f32 %v281, %v333
        %v335 = vpop.f32.mrb[0].mxu0
        %v336 = vpop.f32.mrb[0].mxu0
        %v337 = vpop.f32.mrb[0].mxu0
        %338 = vdwg.mxu0
        %v339 = vxor.u32 %v334, 2147483648
        %v340 = vmul.f32 %v339, 1.442695
        %v341 = vpow.pop %v340
        %v342 = vadd.f32 %v341, 1.0
        %v343 = vrcp.pop %v342
        %v344 = vmul.f32 1.0, %v343
        %v345 = vmul.f32 %v334, %v344
        %v346 = vpack.c.bf16 %v345, %v345
        %v347 = vld [vmem:[#allocation7] sm:$0xf]
        %v348 = vld [vmem:[#allocation7 + $0x4] sm:$0xf]
        %v349 = vld [vmem:[#allocation7 + $0x8] sm:$0xf]
        %v350 = vld [vmem:[#allocation7 + $0xc] sm:$0xf]
        %v351 = vld [vmem:[#allocation7 + $0x10] sm:$0xf]
        %v352 = vld [vmem:[#allocation7 + $0x14] sm:$0xf]
        %v353 = vld [vmem:[#allocation7 + $0x18] sm:$0xf]
        %v354 = vld [vmem:[#allocation7 + $0x1c] sm:$0xf]
        %v355 = vld [vmem:[#allocation7 + $0x20] sm:$0xf]
        %v356 = vld [vmem:[#allocation7 + $0x24] sm:$0xf]
        %v357 = vld [vmem:[#allocation7 + $0x28] sm:$0xf]
        %v358 = vld [vmem:[#allocation7 + $0x2c] sm:$0xf]
        %v359 = vld [vmem:[#allocation7 + $0x30] sm:$0xf]
        %v360 = vld [vmem:[#allocation7 + $0x34] sm:$0xf]
        %v361 = vld [vmem:[#allocation7 + $0x38] sm:$0xf]
        %v362 = vld [vmem:[#allocation7 + $0x3c] sm:$0xf]
        %v363 = vld [vmem:[%s4] sm:$0x1]
        %v365 = vlaneseq
        %v366 = vshrl.u32 %v365, 7
        %v367 = vsub.s32 0, %v366
        %v368 = vrot.slane %v363, %v367
        %v386 = vunpack.c.l.b16 %v347
        %v387 = vunpack.c.l.b16 %v348
        %v388 = vunpack.c.l.b16 %v349
        %v389 = vunpack.c.l.b16 %v350
        %v390 = vunpack.c.l.b16 %v351
        %v391 = vunpack.c.l.b16 %v352
        %v392 = vunpack.c.l.b16 %v353
        %v393 = vunpack.c.l.b16 %v354
        %v394 = vunpack.c.l.b16 %v355
        %v395 = vunpack.c.l.b16 %v356
        %v396 = vunpack.c.l.b16 %v357
        %v397 = vunpack.c.l.b16 %v358
        %v398 = vunpack.c.l.b16 %v359
        %v399 = vunpack.c.l.b16 %v360
        %v400 = vunpack.c.l.b16 %v361
        %v401 = vunpack.c.l.b16 %v362
        %v402 = vpack.c.b16 %v387, %v386
        %v403 = vpack.c.b16 %v389, %v388
        %v404 = vpack.c.b16 %v391, %v390
        %v405 = vpack.c.b16 %v393, %v392
        %v406 = vpack.c.b16 %v395, %v394
        %v407 = vpack.c.b16 %v397, %v396
        %v408 = vpack.c.b16 %v399, %v398
        %v409 = vpack.c.b16 %v401, %v400
        %418 = vmatprep.subr.bf16.mxu0 0
        %419 = vmatpush1.bf16.msra.mxu0 %v402
        %420 = vmatprep.subr.bf16.mxu0 0
        %421 = vmatpush1.bf16.msra.mxu0 %v403
        %422 = vmatprep.subr.bf16.mxu0 0
        %423 = vmatpush1.bf16.msra.mxu0 %v404
        %424 = vmatprep.subr.bf16.mxu0 0
        %425 = vmatpush1.bf16.msra.mxu0 %v405
        %426 = vmatprep.subr.bf16.mxu0 0
        %427 = vmatpush1.bf16.msra.mxu0 %v406
        %428 = vmatprep.subr.bf16.mxu0 0
        %429 = vmatpush1.bf16.msra.mxu0 %v407
        %430 = vmatprep.subr.bf16.mxu0 0
        %431 = vmatpush1.bf16.msra.mxu0 %v408
        %432 = vmatprep.subr.bf16.mxu0 0
        %433 = vmatpush1.bf16.msra.mxu0 %v409
        %434 = vmatprep.subr.bf16.mxu0 0
        %435 = vmatpush1.bf16.msra.mxu0 0
        %436 = vmatprep.subr.bf16.mxu0 0
        %437 = vmatpush1.bf16.msra.mxu0 0
        %438 = vmatprep.subr.bf16.mxu0 0
        %439 = vmatpush1.bf16.msra.mxu0 0
        %440 = vmatprep.subr.bf16.mxu0 0
        %441 = vmatpush1.bf16.msra.mxu0 0
        %442 = vmatprep.subr.bf16.mxu0 0
        %443 = vmatpush1.bf16.msra.mxu0 0
        %444 = vmatprep.subr.bf16.mxu0 0
        %445 = vmatpush1.bf16.msra.mxu0 0
        %446 = vmatprep.subr.bf16.mxu0 0
        %447 = vmatpush1.bf16.msra.mxu0 0
        %448 = vmatprep.subr.bf16.mxu0 0
        %449 = vmatpush1.bf16.msra.mxu0 0
        %450 = vmatprep.mubr.bf16.mxu0 0
        %451 = vmatmul.mubr.bf16.gmra.mrb[0].mxu0 %v346
        %v452 = vpop.f32.mrb[0].mxu0
        %v453 = vadd.f32 %v368, %v452
        %v454 = vpop.f32.mrb[0].mxu0
        %v455 = vpop.f32.mrb[0].mxu0
        %v456 = vpop.f32.mrb[0].mxu0
        %457 = vdwg.mxu0
        %458 = vst [vmem:[%s268] sm:$0xff] %v453
        %s459 = sand.u32 %s141, 1
        %s460 = scalar_lea.sflag [#allocation4], %s459
        %s461 = sand.u32 %s141, 1
        %s462 = smul.addr %s461, 8
        %s463 = scalar_lea.vmem [#allocation8], %s462
        // Predicated region
        $region53: #{tpu_custom_call.1} parent=39 // pred_check
          %p464 = pneg %p151
        $region54: #{tpu_custom_call.1} parent=39 // pred_check_branch
          %466 = sbr.rel (%p464) target = $region56
        $region55: #{tpu_custom_call.1} parent=39 // pred_region
          %s468 = ssub.s32 128, 128
          %469 = vsyncadd %s460, %s468
          %s470 = smul.addr %s23, 128
          %s471 = scalar_lea.hbm %s5, %s470
          %s473 = sshll.u32 %s463, 4
          %s474 = int_to_ptr.vmem [resolvable:$true] %s473
          %476 = dma.vmem_to_hbm [thread:$0]  %s474, 128, %s471, %s460
        $region56: #{tpu_custom_call.1} parent=39 // pred_fallthru
          _
      $region40: #{tpu_custom_call.1} parent=5 // pred_fallthru
        _
      %p477 = scmp.le.s32.totalorder 2, %s18
      // Predicated region
      $region57: #{tpu_custom_call.1} parent=5 // pred_check
        %p478 = pneg %p477
      $region58: #{tpu_custom_call.1} parent=5 // pred_check_branch
        %480 = sbr.rel (%p478) target = $region60
      $region59: #{tpu_custom_call.1} parent=5 // pred_region
        %s481 = ssub.s32 %s18, 2
        // Predicated region
        $region61: #{tpu_custom_call.1} parent=59 // pred_check
          %p482 = pneg %p157
        $region62: #{tpu_custom_call.1} parent=59 // pred_check_branch
          %484 = sbr.rel (%p482) target = $region64
        $region63: #{tpu_custom_call.1} parent=59 // pred_region
          %s485 = sand.u32 %s142, 1
          %s486 = scalar_lea.sflag [#allocation4], %s485
          %s487 = sand.u32 %s142, 1
          %s488 = smul.addr %s487, 8
          %s489 = scalar_lea.vmem [#allocation8], %s488
          %490 = dma.done %s486, 128
        $region64: #{tpu_custom_call.1} parent=59 // pred_fallthru
          _
      $region60: #{tpu_custom_call.1} parent=5 // pred_fallthru
        _
    $region6: #{tpu_custom_call.1} parent=1 // loop_footer
      %s22 = sadd.s32 1, %s18
    $region7: #{tpu_custom_call.1} parent=1 // loop_footer_branch
      %17 = sbr.rel target = $region3
    $region8: #{tpu_custom_call.1} parent=1 // loop_exit
      _
    %491 = vsyncpa [#allocation3], 1
    %s492 = scalar_lea.sflag [#allocation3], 1
    %493 = vsyncpa %s492, 1
    %494 = vsyncpa [#allocation6], 1
    %495 = vsyncpa [#allocation4], 1
    %s496 = scalar_lea.sflag [#allocation4], 1
    %497 = vsyncpa %s496, 1

</llo_original>
